<compile_context>
chip_gen: v6e
topology: v6e:2x2x1
jax: 0.10.0
libtpu: 0.0.40
codegen_flags: <defaults>
</compile_context>

<pallas_src>
import jax
import jax.numpy as jnp
from jax.experimental import pallas as pl
from jax.experimental.pallas import tpu as pltpu


_CANDIDATE_COLS = (1024, 512, 256, 128)   # lane-dense widths (multiples of 128)


# --------------------------- generation sniffing --------------------------- #
def _tpu_generation() -> str:
    """Best-effort TPU generation from the device kind string."""
    try:
        kind = jax.devices()[0].device_kind.lower()
    except Exception:
        return "other"
    if "v7" in kind:
        return "v7"
    if "v5e" in kind or "v5 lite" in kind or "v5lite" in kind:
        return "v5e"
    return "other"   # v4 / v5p / v6e / unknown: fast HBM, >=32 MiB scoped VMEM


_GEN = _tpu_generation()


def _block_target_bytes(gen: str) -> int:
    if gen == "v5e":
        return 2 << 20        # stay well under the 16 MiB scoped-VMEM default
    return 6 << 20            # v6e/v7x/v4/v5p: amortize the ~0.35us/step overhead


def _vmem_limit_bytes(gen: str, block_bytes: int):
    if gen == "v5e":
        return None           # 2 MiB blocks -> ~8 MiB resident, default limit is fine
    # double-buffered in+out (4 x block) plus margin; capped below v7x's 64 MiB physical
    return int(min(48 << 20, max(32 << 20, 4 * block_bytes + (8 << 20))))


def _sublane_multiple(dtype) -> int:
    itemsize = jnp.dtype(dtype).itemsize
    return max(8, 32 // itemsize)   # 8 for f32, 16 for bf16/f16, 32 for int8/fp8


# ----------------------------- Pallas kernel ------------------------------ #
def _quantize_kernel(params_ref, x_ref, o_ref):
    # params_ref: SMEM f32[4] = [inv_step, step, qmin, qmax]
    inv_step = params_ref[0]
    step = params_ref[1]
    qmin = params_ref[2]
    qmax = params_ref[3]
    x = x_ref[...].astype(jnp.float32)
    clipped = jnp.clip(x, qmin, qmax)           # clip first: ragged-block garbage is tamed
    # jnp.round == round-half-to-even, matching torch.round.
    # multiply by exact reciprocal instead of dividing (step is a power of 2).
    o_ref[...] = (step * jnp.round(clipped * inv_step)).astype(o_ref.dtype)


# ------------------------------ tiling logic ------------------------------ #
def _choose_tiling(total: int, dtype):
    """Pick (rows, cols, block_rows, padded). cols divides `total` whenever
    possible so the wrapper adds no pad / no output slice; block_rows is
    sublane-aligned for the dtype; ragged last row-block handled by cdiv grid."""
    itemsize = jnp.dtype(dtype).itemsize
    sub = _sublane_multiple(dtype)
    cols = next((c for c in _CANDIDATE_COLS if total % c == 0), None)
    padded = cols is None
    if padded:
        cols = _CANDIDATE_COLS[0]
    rows = -(-total // cols)                    # ceil
    if rows < sub:
        # tiny slab: single block equal to the full array (exempt from (8,128))
        return rows, cols, rows, padded
    max_br = max(sub, _block_target_bytes(_GEN) // (cols * itemsize))
    br = min(rows, max_br)
    br = (br // sub) * sub                      # dtype-aware sublane alignment
    return rows, cols, br, padded


def _quantize_pallas(x2d: jax.Array, params: jax.Array, block_rows: int) -> jax.Array:
    rows, cols = x2d.shape
    itemsize = jnp.dtype(x2d.dtype).itemsize
    grid = (pl.cdiv(rows, block_rows),)

    if _GEN == "v7" and grid[0] > 1:
        dim_sem = (pltpu.CORE_PARALLEL,)        # actually split rows across the 2 TCs
    else:
        dim_sem = ("parallel",)

    cp_kwargs = dict(dimension_semantics=dim_sem)
    vmem_limit = _vmem_limit_bytes(_GEN, block_rows * cols * itemsize)
    if vmem_limit is not None:
        cp_kwargs["vmem_limit_bytes"] = vmem_limit

    return pl.pallas_call(
        _quantize_kernel,
        out_shape=jax.ShapeDtypeStruct((rows, cols), x2d.dtype),
        grid_spec=pltpu.PrefetchScalarGridSpec(
            num_scalar_prefetch=0,
            grid=grid,
            in_specs=[
                pl.BlockSpec(memory_space=pltpu.MemorySpace.SMEM),     # params
                pl.BlockSpec((block_rows, cols), lambda i: (i, 0)),    # x tile
            ],
            out_specs=pl.BlockSpec((block_rows, cols), lambda i: (i, 0)),
        ),
        compiler_params=pltpu.CompilerParams(**cp_kwargs),
        cost_estimate=pl.CostEstimate(
            flops=5 * rows * cols,
            transcendentals=0,
            bytes_accessed=2 * rows * cols * itemsize,
        ),
    )(params, x2d)


# ------------------------------ Module glue ------------------------------- #
class Quantizer:
    """JAX/Pallas port of the PyTorch Quantizer (forward pass only)."""
    # TODO(synk): STERound/STECeil straight-through backward and parameter
    # training (set_mode/set_qmax_step grad toggles) are not represented in
    # this forward-only port.

    def __init__(self, signed: bool, b_min: int = 2, pallas_min_bytes: int = 1 << 20):
        # deterministic init matching nn.Module __init__
        self.qmax = jnp.float32(1.0)
        self.qmax_min, self.qmax_max = (2.0 ** (-8), 255.0)
        self.step = jnp.float32(2.0 ** (-3))
        self.step_min, self.step_max = (2.0 ** (-8), 1.0)
        self.signed = signed
        self.b_min = b_min
        self.activated = True
        # below this many bytes the jnp fast path is used (launch-overhead bound)
        self.pallas_min_bytes = pallas_min_bytes

    def _clip_params(self):
        step = jnp.clip(self.step, self.step_min, self.step_max)
        step = jnp.exp2(jnp.round(jnp.log2(step)))  # snap to power of 2
        qmax = jnp.clip(self.qmax, self.qmax_min, self.qmax_max)
        return step, qmax

    def b(self) -> jax.Array:
        if not self.activated:
            return jnp.float32(32.0)
        step, qmax = self._clip_params()
        qmax = jnp.round(qmax / step) * step
        b = jnp.ceil(jnp.log2(qmax / step + 1.0))      # STECeil forward == ceil
        return jnp.maximum(b + float(int(self.signed)), float(self.b_min))

    def __call__(self, x: jax.Array) -> jax.Array:
        if not self.activated:
            return x
        step, qmax = self._clip_params()
        qmin = -qmax if self.signed else jnp.float32(0.0)
        inv_step = jnp.float32(1.0) / step            # exact: step is a power of two

        total = x.size
        nbytes = total * jnp.dtype(x.dtype).itemsize
        if total == 0 or nbytes < self.pallas_min_bytes:
            # tiny tensors: plain jnp, let XLA fuse with neighbors
            xf = x.astype(jnp.float32)
            return (step * jnp.round(jnp.clip(xf, qmin, qmax) * inv_step)).astype(x.dtype)

        params = jnp.stack([inv_step, step, qmin, qmax]).astype(jnp.float32)

        orig_shape = x.shape
        rows, cols, block_rows, padded = _choose_tiling(total, x.dtype)

        x_flat = x.reshape(-1)
        if padded:
            # fallback only when total is not divisible by 128 (rare for ML shapes);
            # pad costs one extra HBM pass, which the divisible path avoids entirely.
            x_flat = jnp.pad(x_flat, (0, rows * cols - total))
        x2d = x_flat.reshape(rows, cols)

        out2d = _quantize_pallas(x2d, params, block_rows)
        if padded:
            return out2d.reshape(-1)[:total].reshape(orig_shape)
        return out2d.reshape(orig_shape)


# --------------------------------- Main ----------------------------------- #
if __name__ == "__main__":
    key = jax.random.PRNGKey(0)
    # NCHW, consistent with PyTorch conv-activation quantization usage.
    x = jax.random.normal(key, (2, 4, 16, 16), dtype=jnp.float32) * 2.0

    # pallas_min_bytes=0 forces the kernel path even at this demo size.
    quant = Quantizer(signed=True, b_min=2, pallas_min_bytes=0)
    out = quant(x)
    out = jax.block_until_ready(out)

    # Pure-JAX reference check of the same semantics.
    step = jnp.exp2(jnp.round(jnp.log2(jnp.clip(jnp.float32(2.0 ** (-3)), 2.0 ** -8, 1.0))))
    qmax = jnp.clip(jnp.float32(1.0), 2.0 ** -8, 255.0)
    ref = step * jnp.round(jnp.clip(x, -qmax, qmax) / step)
    assert out.shape == x.shape and out.dtype == x.dtype
    assert jnp.allclose(out, ref, atol=1e-6), "mismatch vs reference"

    print("KERNEL_OK")
</pallas_src>

<mosaic_0001>
module attributes {stable_mosaic.version = 11 : i64} {
  func.func @_quantize_kernel(%arg0: i32, %arg1: memref<4xf32, #tpu.memory_space<smem>>, %arg2: memref<2x1024xf32, #tpu.memory_space<vmem>>, %arg3: memref<2x1024xf32, #tpu.memory_space<vmem>>) attributes {dimension_semantics = [#tpu.dimension_semantics<parallel>], iteration_bounds = array<i64: 1>, scalar_prefetch = 0 : i64, scratch_operands = 0 : i64, tpu.core_type = #tpu.core_type<tc>, window_params = [{transform_indices = @transform_0, window_bounds = array<i64: 4>}, {transform_indices = @transform_1, window_bounds = array<i64: 2, 1024>}, {transform_indices = @transform_2, window_bounds = array<i64: 2, 1024>}]} {
    %c0 = arith.constant 0 : index
    %0 = memref.load %arg1[%c0] : memref<4xf32, #tpu.memory_space<smem>>
    %c1 = arith.constant 1 : index
    %1 = memref.load %arg1[%c1] : memref<4xf32, #tpu.memory_space<smem>>
    %c2 = arith.constant 2 : index
    %2 = memref.load %arg1[%c2] : memref<4xf32, #tpu.memory_space<smem>>
    %c3 = arith.constant 3 : index
    %3 = memref.load %arg1[%c3] : memref<4xf32, #tpu.memory_space<smem>>
    %c0_0 = arith.constant 0 : index
    %c0_1 = arith.constant 0 : index
    %4 = vector.load %arg2[%c0_0, %c0_1] : memref<2x1024xf32, #tpu.memory_space<vmem>>, vector<2x1024xf32>
    %5 = vector.broadcast %2 : f32 to vector<2x1024xf32>
    %6 = arith.maximumf %5, %4 : vector<2x1024xf32>
    %7 = vector.broadcast %3 : f32 to vector<2x1024xf32>
    %8 = arith.minimumf %7, %6 : vector<2x1024xf32>
    %9 = vector.broadcast %0 : f32 to vector<2x1024xf32>
    %10 = arith.mulf %8, %9 : vector<2x1024xf32>
    %11 = math.roundeven %10 : vector<2x1024xf32>
    %12 = vector.broadcast %1 : f32 to vector<2x1024xf32>
    %13 = arith.mulf %12, %11 : vector<2x1024xf32>
    %c0_2 = arith.constant 0 : index
    %c0_3 = arith.constant 0 : index
    %14 = vector.load %arg3[%c0_2, %c0_3] : memref<2x1024xf32, #tpu.memory_space<vmem>>, vector<2x1024xf32>
    tpu.vector_store %arg3[%c0_2, %c0_3], %13 {strides = array<i32>} : memref<2x1024xf32, #tpu.memory_space<vmem>>, vector<2x1024xf32>,
    return
  }
  func.func @transform_0(%arg0: i32) -> i32 {
    %c0_i32 = arith.constant 0 : i32
    %c0_i32_0 = arith.constant 0 : i32
    return %c0_i32 : i32
  }
  func.func @transform_1(%arg0: i32) -> (i32, i32) {
    %c0_i32 = arith.constant 0 : i32
    %c0_i32_0 = arith.constant 0 : i32
    return %arg0, %c0_i32 : i32, i32
  }
  func.func @transform_2(%arg0: i32) -> (i32, i32) {
    %c0_i32 = arith.constant 0 : i32
    %c0_i32_0 = arith.constant 0 : i32
    return %arg0, %c0_i32 : i32, i32
  }
}

</mosaic_0001>

<llo_original>
// kernel: tpu_custom_call.1
$region0: #{tpu_custom_call.1}
  #allocation0 [shape = 'u32[]', space=smem, size = 0x4, offset = 0x4, fixed_abs, tag = 'smem constant byte address 0x4 - core index']
  #allocation1 [shape = 'u32[144,128]{1,0:T(1,128)}', space=vmem, size = 0x12000, scoped, tag = 'internal scratch']
  %s0 = inlined_call_operand.hbm [shape: f32[4], index: 0, kind: input, shape index: {}]
  %s1 = inlined_call_operand.hbm [shape: f32[2,1024], index: 1, kind: input, shape index: {}]
  %s2 = inlined_call_operand.hbm [shape: f32[2,1024], index: 2, kind: output, shape index: {}]
  %s3 = sld [smem:[#allocation0]]
  $region26: #{tpu_custom_call.1} parent=0
    _
  %s5 = ssub.s32 1, %s3
  %s6 = scalar_select 0, %s5, %s3
  $region1: #{tpu_custom_call.1} parent=0
    #allocation2 [shape = 'u8[512]{0}', space=smem, size = 0x200, scoped, tag = 'input window, operand 0, single buffered']
    #allocation3 [shape = 's32[1]{0}', space=sflag, size = 0x4, scoped, tag = 'scoped memory for tpu_custom_call.1']
    #allocation4 [shape = 's32[1]{0}', space=sflag, size = 0x4, scoped, tag = 'scoped memory for tpu_custom_call.1']
    #allocation5 [shape = 's32[1]{0}', space=sflag, size = 0x4, scoped, tag = 'scoped memory for tpu_custom_call.1']
    #allocation6 [shape = 'u8[8192]{0}', space=vmem, size = 0x2000, scoped, tag = 'input window, operand 1, single buffered']
    #allocation7 [shape = 'u8[8192]{0}', space=vmem, size = 0x2000, scoped, tag = 'output window, operand 0, single buffered']
    %7 = vsyncpa [#allocation5], 0
    %8 = vsyncpa [#allocation3], 0
    %9 = vsyncpa [#allocation4], 0
    // Predicated region
    $region2: #{tpu_custom_call.1} parent=1 // pred_check
      _
    $region3: #{tpu_custom_call.1} parent=1 // pred_check_branch
      %11 = sbr.rel (0) target = $region5
    $region4: #{tpu_custom_call.1} parent=1 // pred_region
      %s13 = ssub.s32 16, 16
      %14 = vsyncadd [#allocation5], %s13
      %17 = dma.hbm_to_smem %s0, 16, [#allocation2], [#allocation5]
    $region5: #{tpu_custom_call.1} parent=1 // pred_fallthru
      _
    // Predicated region
    $region6: #{tpu_custom_call.1} parent=1 // pred_check
      _
    $region7: #{tpu_custom_call.1} parent=1 // pred_check_branch
      %19 = sbr.rel (0) target = $region9
    $region8: #{tpu_custom_call.1} parent=1 // pred_region
      %s21 = ssub.s32 256, 256
      %22 = vsyncadd [#allocation3], %s21
      %s24 = sshll.u32 [#allocation6], 4
      %s25 = int_to_ptr.vmem [resolvable:$true] %s24
      %27 = dma.hbm_to_vmem [thread:$0]  %s1, 256, %s25, [#allocation3]
    $region9: #{tpu_custom_call.1} parent=1 // pred_fallthru
      _
    // Predicated region
    $region10: #{tpu_custom_call.1} parent=1 // pred_check
      _
    $region11: #{tpu_custom_call.1} parent=1 // pred_check_branch
      %29 = sbr.rel (0) target = $region13
    $region12: #{tpu_custom_call.1} parent=1 // pred_region
      %30 = dma.done [#allocation5], 16
    $region13: #{tpu_custom_call.1} parent=1 // pred_fallthru
      _
    // Predicated region
    $region14: #{tpu_custom_call.1} parent=1 // pred_check
      _
    $region15: #{tpu_custom_call.1} parent=1 // pred_check_branch
      %32 = sbr.rel (0) target = $region17
    $region16: #{tpu_custom_call.1} parent=1 // pred_region
      %33 = dma.done [#allocation3], 256
    $region17: #{tpu_custom_call.1} parent=1 // pred_fallthru
      _
    %34 = sfence
    %s35 = sld [smem:[#allocation2]]
    %s36 = sld [smem:[#allocation2 + $0x1]]
    %s37 = sld [smem:[#allocation2 + $0x2]]
    %s38 = sld [smem:[#allocation2 + $0x3]]
    %v39 = vld [vmem:[#allocation6] sm:$0xff]
    %v40 = vld [vmem:[#allocation6 + $0x8] sm:$0xff]
    %v41 = vstv %s37
    %v42 = vmax.f32 %v41, %v39
    %v43 = vmax.f32 %v41, %v40
    %v44 = vstv %s38
    %v45 = vmin.f32 %v44, %v42
    %v46 = vmin.f32 %v44, %v43
    %v47 = vstv %s35
    %v48 = vmul.f32 %v45, %v47
    %v49 = vmul.f32 %v46, %v47
    %v50 = vround.ne.pseudo %v48
    %v51 = vround.ne.pseudo %v49
    %v52 = vstv %s36
    %v53 = vmul.f32 %v52, %v50
    %v54 = vmul.f32 %v52, %v51
    %55 = vst [vmem:[#allocation7] sm:$0xff] %v53
    %56 = vst [vmem:[#allocation7 + $0x8] sm:$0xff] %v54
    // Predicated region
    $region18: #{tpu_custom_call.1} parent=1 // pred_check
      _
    $region19: #{tpu_custom_call.1} parent=1 // pred_check_branch
      %58 = sbr.rel (0) target = $region21
    $region20: #{tpu_custom_call.1} parent=1 // pred_region
      %s60 = ssub.s32 256, 256
      %61 = vsyncadd [#allocation4], %s60
      %s63 = sshll.u32 [#allocation7], 4
      %s64 = int_to_ptr.vmem [resolvable:$true] %s63
      %66 = dma.vmem_to_hbm [thread:$0]  %s64, 256, %s2, [#allocation4]
    $region21: #{tpu_custom_call.1} parent=1 // pred_fallthru
      _
    // Predicated region
    $region22: #{tpu_custom_call.1} parent=1 // pred_check
      _
    $region23: #{tpu_custom_call.1} parent=1 // pred_check_branch
      %68 = sbr.rel (0) target = $region25
    $region24: #{tpu_custom_call.1} parent=1 // pred_region
      %69 = dma.done [#allocation4], 256
    $region25: #{tpu_custom_call.1} parent=1 // pred_fallthru
      _
    %70 = vsyncpa [#allocation3], 1
    %71 = vsyncpa [#allocation4], 1
    %72 = vsyncpa [#allocation5], 1

</llo_original>
